<compile_context>
chip_gen: v6e
topology: v6e:2x2x1
jax: 0.10.0
libtpu: 0.0.40
codegen_flags: <defaults>
</compile_context>

<pallas_src>
import jax
import jax.numpy as jnp
from jax.experimental import pallas as pl
from jax.experimental.pallas import tpu as pltpu

HIDDEN_PAD = 128   # hidden dim padded 100 -> 128 (one full lane width)
OUT_PAD = 8        # output lanes padded 3 -> 8; sliced to 3 in the wrapper


def _round_up(x, m):
    return ((x + m - 1) // m) * m


def _fc_translation_head_kernel(
    x_mlp_ref, x_car_ref,
    w1_ref, b1_ref,
    w2_ref, b2_ref,
    wc_ref, bc_ref,
    wtb_ref, wtc_ref, bt_ref,
    out_ref,
):
    # bboxes branch: two FC + ReLU (padded to 128 lanes, zeros in padding).
    h_b = jnp.dot(x_mlp_ref[...], w1_ref[...],
                  preferred_element_type=jnp.float32)
    h_b = jnp.maximum(h_b + b1_ref[...], 0.0)
    h_b = jnp.dot(h_b, w2_ref[...], preferred_element_type=jnp.float32)
    h_b = jnp.maximum(h_b + b2_ref[...], 0.0)

    # car_cls_rot branch: one FC + ReLU. The f32 -> bf16 cast happens HERE
    # (in-kernel), so x_car is read from HBM exactly once and no separate XLA
    # cast op runs outside the pallas_call. MXU accumulates in f32.
    x_car_bf16 = x_car_ref[...].astype(jnp.bfloat16)
    h_c = jnp.dot(x_car_bf16, wc_ref[...],
                  preferred_element_type=jnp.float32)
    h_c = jnp.maximum(h_c + bc_ref[...], 0.0)

    # trans_pred: concat replaced by a split weight -> no cross-lane shuffle.
    # NOTE: the module's relu(concat([h_b, h_c])) is dropped ONLY because both
    # branch outputs already passed through ReLU (>= 0). Keep that invariant.
    out = jnp.dot(h_b, wtb_ref[...], preferred_element_type=jnp.float32)
    out = out + jnp.dot(h_c, wtc_ref[...], preferred_element_type=jnp.float32)
    out_ref[...] = (out + bt_ref[...]).astype(out_ref.dtype)


def pack_params(params, *, car_weight_dtype=jnp.bfloat16):
    """Pad hidden dim to 128 lanes, pad the output to 8 lanes, split wt into
    bboxes/car halves, and cast the heavy wc weight to bf16 (f32 accumulation
    keeps the rest of the math exact). All padding is zeros, so the padded
    lanes stay exactly zero through the ReLUs."""
    fc = params["w1"].shape[1]           # original fc_out_channels (100)
    hp, op = HIDDEN_PAD, OUT_PAD

    def pad2(a, rows, cols):
        return jnp.pad(a, ((0, rows - a.shape[0]), (0, cols - a.shape[1])))

    return {
        "w1": pad2(params["w1"], params["w1"].shape[0], hp),
        "b1": pad2(params["b1"], 1, hp),
        "w2": pad2(params["w2"], hp, hp),
        "b2": pad2(params["b2"], 1, hp),
        "wc": pad2(params["wc"], params["wc"].shape[0], hp).astype(car_weight_dtype),
        "bc": pad2(params["bc"], 1, hp),
        "wt_b": pad2(params["wt"][:fc], hp, op),
        "wt_c": pad2(params["wt"][fc:], hp, op),
        "bt": pad2(params["bt"], 1, op),
    }


def _choose_row_tile(n_rows, tile_rows):
    """Row tile: multiple of 8, capped at tile_rows, and small enough that the
    grid has >= 2 steps whenever N > 8 (so v7x's two TensorCores both get work
    and v5e/v6e get DMA/compute overlap)."""
    n = max(int(n_rows), 1)
    return max(8, min(int(tile_rows), _round_up((n + 1) // 2, 8)))


def fc_translation_head_forward(x_mlp, x_car, packed, *,
                                num_translation_reg=3, tile_rows=1024):
    """Run the FCTranslationHead forward pass with one row-tiled pallas_call.

    packed: output of pack_params (padded / split / bf16-cast weights).
    x_mlp: (N, in_channels_bboxes) f32, x_car: (N, in_channels_carclsrot) f32.
    """
    N, din_b = x_mlp.shape
    _, din_c = x_car.shape

    tile = _choose_row_tile(N, tile_rows)
    grid = (pl.cdiv(N, tile),)   # ragged last block; no jnp.pad HBM copies

    weights = (
        packed["w1"], packed["b1"],
        packed["w2"], packed["b2"],
        packed["wc"], packed["bc"],
        packed["wt_b"], packed["wt_c"], packed["bt"],
    )

    def resident(a):
        # Full-array block, constant index -> stays resident in VMEM.
        # (Single-buffering these via pipeline_mode would save ~0.7 MB of dead
        #  second copies; negligible at these tile sizes, so left default.)
        return pl.BlockSpec(a.shape, lambda i: (0, 0))

    out = pl.pallas_call(
        _fc_translation_head_kernel,
        out_shape=jax.ShapeDtypeStruct((N, OUT_PAD), jnp.float32),
        grid=grid,
        in_specs=[
            pl.BlockSpec((tile, din_b), lambda i: (i, 0)),   # x_mlp row tile
            pl.BlockSpec((tile, din_c), lambda i: (i, 0)),   # x_car row tile (f32)
            *[resident(a) for a in weights],
        ],
        out_specs=pl.BlockSpec((tile, OUT_PAD), lambda i: (i, 0)),
        compiler_params=pltpu.CompilerParams(
            dimension_semantics=("parallel",),               # dual-TC on v7x
            vmem_limit_bytes=48 * 1024 * 1024,               # headroom for 1024-row tiles
        ),
    )(x_mlp, x_car, *weights)

    return out[:, :num_translation_reg]


def init_params(key, in_channels_bboxes=4, in_channels_carclsrot=1024,
                fc_out_channels=100, num_translation_reg=3):
    """Deterministic xavier-uniform weights, zero biases (as in init_weights).
    Weights are stored as [in, out] (transposed vs. nn.Linear.weight)."""
    def xavier(k, fan_in, fan_out):
        limit = jnp.sqrt(6.0 / (fan_in + fan_out))
        return jax.random.uniform(
            k, (fan_in, fan_out), jnp.float32, minval=-limit, maxval=limit)

    k1, k2, k3, k4 = jax.random.split(key, 4)
    return {
        "w1": xavier(k1, in_channels_bboxes, fc_out_channels),
        "b1": jnp.zeros((1, fc_out_channels), jnp.float32),
        "w2": xavier(k2, fc_out_channels, fc_out_channels),
        "b2": jnp.zeros((1, fc_out_channels), jnp.float32),
        "wc": xavier(k3, in_channels_carclsrot, fc_out_channels),
        "bc": jnp.zeros((1, fc_out_channels), jnp.float32),
        "wt": xavier(k4, 2 * fc_out_channels, num_translation_reg),
        "bt": jnp.zeros((1, num_translation_reg), jnp.float32),
    }


def reference_forward_f32(x_mlp, x_car, p):
    """Plain-JAX full-f32 reference (exact module semantics)."""
    h_b = jax.nn.relu(x_mlp @ p["w1"] + p["b1"])
    h_b = jax.nn.relu(h_b @ p["w2"] + p["b2"])
    h_c = jax.nn.relu(x_car @ p["wc"] + p["bc"])
    m = jax.nn.relu(jnp.concatenate([h_b, h_c], axis=1))
    return m @ p["wt"] + p["bt"]


def reference_forward_bf16car(x_mlp, x_car, p):
    """Reference matching the kernel's bf16 car-branch inputs (f32 accum)."""
    h_b = jax.nn.relu(x_mlp @ p["w1"] + p["b1"])
    h_b = jax.nn.relu(h_b @ p["w2"] + p["b2"])
    h_c = jnp.dot(x_car.astype(jnp.bfloat16), p["wc"].astype(jnp.bfloat16),
                  preferred_element_type=jnp.float32)
    h_c = jax.nn.relu(h_c + p["bc"])
    m = jnp.concatenate([h_b, h_c], axis=1)
    return m @ p["wt"] + p["bt"]


if __name__ == "__main__":
    # Small shapes consistent with the module defaults.
    in_channels_bboxes = 4
    in_channels_carclsrot = 1024
    fc_out_channels = 100
    num_translation_reg = 3

    key = jax.random.PRNGKey(0)
    kx, kp = jax.random.split(key)

    params = init_params(
        kp, in_channels_bboxes, in_channels_carclsrot,
        fc_out_channels, num_translation_reg,
    )
    packed = pack_params(params)

    # N = 8  : tile-aligned, single grid step.
    # N = 13 : ragged last block + 2 grid steps (exercises boundary masking
    #          and the >=2-step tiling used for dual-TC sharding).
    for N in (8, 13):
        kxn, kcn = jax.random.split(jax.random.fold_in(kx, N))
        x_mlp = jax.random.normal(kxn, (N, in_channels_bboxes), jnp.float32)
        x_car = jax.random.normal(kcn, (N, in_channels_carclsrot), jnp.float32)

        out = fc_translation_head_forward(
            x_mlp, x_car, packed, num_translation_reg=num_translation_reg)
        out = jax.block_until_ready(out)
        assert out.shape == (N, num_translation_reg)

        # Tight check vs. reference with matching bf16 car-branch inputs.
        ref_bf16 = reference_forward_bf16car(x_mlp, x_car, params)
        assert jnp.allclose(out, ref_bf16, atol=2e-3, rtol=2e-3)

        # Loose check vs. the full-f32 module semantics (bf16 cast is the only
        # source of difference).
        ref_f32 = reference_forward_f32(x_mlp, x_car, params)
        assert jnp.allclose(out, ref_f32, atol=5e-2, rtol=5e-2)

    print("KERNEL_OK")
</pallas_src>

<mosaic_0001>
module attributes {stable_mosaic.version = 11 : i64} {
  func.func @_fc_translation_head_kernel(%arg0: i32, %arg1: memref<8x4xf32, #tpu.memory_space<vmem>>, %arg2: memref<8x1024xf32, #tpu.memory_space<vmem>>, %arg3: memref<4x128xf32, #tpu.memory_space<vmem>>, %arg4: memref<1x128xf32, #tpu.memory_space<vmem>>, %arg5: memref<128x128xf32, #tpu.memory_space<vmem>>, %arg6: memref<1x128xf32, #tpu.memory_space<vmem>>, %arg7: memref<1024x128xbf16, #tpu.memory_space<vmem>>, %arg8: memref<1x128xf32, #tpu.memory_space<vmem>>, %arg9: memref<128x8xf32, #tpu.memory_space<vmem>>, %arg10: memref<128x8xf32, #tpu.memory_space<vmem>>, %arg11: memref<1x8xf32, #tpu.memory_space<vmem>>, %arg12: memref<8x8xf32, #tpu.memory_space<vmem>>) attributes {dimension_semantics = [#tpu.dimension_semantics<parallel>], iteration_bounds = array<i64: 1>, scalar_prefetch = 0 : i64, scratch_operands = 0 : i64, tpu.core_type = #tpu.core_type<tc>, window_params = [{transform_indices = @transform_0, window_bounds = array<i64: 8, 4>}, {transform_indices = @transform_1, window_bounds = array<i64: 8, 1024>}, {pipeline_mode = #tpu.pipeline_mode<synchronous>, transform_indices = @transform_2, window_bounds = array<i64: 4, 128>}, {pipeline_mode = #tpu.pipeline_mode<synchronous>, transform_indices = @transform_3, window_bounds = array<i64: 1, 128>}, {pipeline_mode = #tpu.pipeline_mode<synchronous>, transform_indices = @transform_4, window_bounds = array<i64: 128, 128>}, {pipeline_mode = #tpu.pipeline_mode<synchronous>, transform_indices = @transform_5, window_bounds = array<i64: 1, 128>}, {pipeline_mode = #tpu.pipeline_mode<synchronous>, transform_indices = @transform_6, window_bounds = array<i64: 1024, 128>}, {pipeline_mode = #tpu.pipeline_mode<synchronous>, transform_indices = @transform_7, window_bounds = array<i64: 1, 128>}, {pipeline_mode = #tpu.pipeline_mode<synchronous>, transform_indices = @transform_8, window_bounds = array<i64: 128, 8>}, {pipeline_mode = #tpu.pipeline_mode<synchronous>, transform_indices = @transform_9, window_bounds = array<i64: 128, 8>}, {pipeline_mode = #tpu.pipeline_mode<synchronous>, transform_indices = @transform_10, window_bounds = array<i64: 1, 8>}, {transform_indices = @transform_11, window_bounds = array<i64: 8, 8>}]} {
    %c0 = arith.constant 0 : index
    %c0_0 = arith.constant 0 : index
    %0 = vector.load %arg1[%c0, %c0_0] : memref<8x4xf32, #tpu.memory_space<vmem>>, vector<8x4xf32>
    %c0_1 = arith.constant 0 : index
    %c0_2 = arith.constant 0 : index
    %1 = vector.load %arg3[%c0_1, %c0_2] : memref<4x128xf32, #tpu.memory_space<vmem>>, vector<4x128xf32>
    %cst = arith.constant dense<0.000000e+00> : vector<8x128xf32>
    %2 = tpu.matmul %0, %1, %cst {dimension_numbers = #tpu.dot_dimension_numbers<[1], [0], [0], [1], [0, 0, 1, 1], [], []>} : vector<8x4xf32>, vector<4x128xf32>, vector<8x128xf32> -> vector<8x128xf32>
    %c0_3 = arith.constant 0 : index
    %c0_4 = arith.constant 0 : index
    %3 = vector.load %arg4[%c0_3, %c0_4] : memref<1x128xf32, #tpu.memory_space<vmem>>, vector<1x128xf32>
    %4 = vector.broadcast %3 : vector<1x128xf32> to vector<8x128xf32>
    %5 = arith.addf %2, %4 : vector<8x128xf32>
    %cst_5 = arith.constant 0.000000e+00 : f32
    %6 = vector.broadcast %cst_5 : f32 to vector<8x128xf32>
    %7 = arith.maximumf %5, %6 : vector<8x128xf32>
    %c0_6 = arith.constant 0 : index
    %c0_7 = arith.constant 0 : index
    %8 = vector.load %arg5[%c0_6, %c0_7] : memref<128x128xf32, #tpu.memory_space<vmem>>, vector<128x128xf32>
    %cst_8 = arith.constant dense<0.000000e+00> : vector<8x128xf32>
    %9 = tpu.matmul %7, %8, %cst_8 {dimension_numbers = #tpu.dot_dimension_numbers<[1], [0], [0], [1], [0, 0, 1, 1], [], []>} : vector<8x128xf32>, vector<128x128xf32>, vector<8x128xf32> -> vector<8x128xf32>
    %c0_9 = arith.constant 0 : index
    %c0_10 = arith.constant 0 : index
    %10 = vector.load %arg6[%c0_9, %c0_10] : memref<1x128xf32, #tpu.memory_space<vmem>>, vector<1x128xf32>
    %11 = vector.broadcast %10 : vector<1x128xf32> to vector<8x128xf32>
    %12 = arith.addf %9, %11 : vector<8x128xf32>
    %cst_11 = arith.constant 0.000000e+00 : f32
    %13 = vector.broadcast %cst_11 : f32 to vector<8x128xf32>
    %14 = arith.maximumf %12, %13 : vector<8x128xf32>
    %c0_12 = arith.constant 0 : index
    %c0_13 = arith.constant 0 : index
    %15 = vector.load %arg2[%c0_12, %c0_13] : memref<8x1024xf32, #tpu.memory_space<vmem>>, vector<8x1024xf32>
    %16 = arith.truncf %15 : vector<8x1024xf32> to vector<8x1024xbf16>
    %c0_14 = arith.constant 0 : index
    %c0_15 = arith.constant 0 : index
    %17 = vector.load %arg7[%c0_14, %c0_15] : memref<1024x128xbf16, #tpu.memory_space<vmem>>, vector<1024x128xbf16>
    %cst_16 = arith.constant dense<0.000000e+00> : vector<8x128xf32>
    %18 = tpu.matmul %16, %17, %cst_16 {dimension_numbers = #tpu.dot_dimension_numbers<[1], [0], [0], [1], [0, 0, 1, 1], [], []>} : vector<8x1024xbf16>, vector<1024x128xbf16>, vector<8x128xf32> -> vector<8x128xf32>
    %c0_17 = arith.constant 0 : index
    %c0_18 = arith.constant 0 : index
    %19 = vector.load %arg8[%c0_17, %c0_18] : memref<1x128xf32, #tpu.memory_space<vmem>>, vector<1x128xf32>
    %20 = vector.broadcast %19 : vector<1x128xf32> to vector<8x128xf32>
    %21 = arith.addf %18, %20 : vector<8x128xf32>
    %cst_19 = arith.constant 0.000000e+00 : f32
    %22 = vector.broadcast %cst_19 : f32 to vector<8x128xf32>
    %23 = arith.maximumf %21, %22 : vector<8x128xf32>
    %c0_20 = arith.constant 0 : index
    %c0_21 = arith.constant 0 : index
    %24 = vector.load %arg9[%c0_20, %c0_21] : memref<128x8xf32, #tpu.memory_space<vmem>>, vector<128x8xf32>
    %cst_22 = arith.constant dense<0.000000e+00> : vector<8x8xf32>
    %25 = tpu.matmul %14, %24, %cst_22 {dimension_numbers = #tpu.dot_dimension_numbers<[1], [0], [0], [1], [0, 0, 1, 1], [], []>} : vector<8x128xf32>, vector<128x8xf32>, vector<8x8xf32> -> vector<8x8xf32>
    %c0_23 = arith.constant 0 : index
    %c0_24 = arith.constant 0 : index
    %26 = vector.load %arg10[%c0_23, %c0_24] : memref<128x8xf32, #tpu.memory_space<vmem>>, vector<128x8xf32>
    %cst_25 = arith.constant dense<0.000000e+00> : vector<8x8xf32>
    %27 = tpu.matmul %23, %26, %cst_25 {dimension_numbers = #tpu.dot_dimension_numbers<[1], [0], [0], [1], [0, 0, 1, 1], [], []>} : vector<8x128xf32>, vector<128x8xf32>, vector<8x8xf32> -> vector<8x8xf32>
    %28 = arith.addf %25, %27 : vector<8x8xf32>
    %c0_26 = arith.constant 0 : index
    %c0_27 = arith.constant 0 : index
    %29 = vector.load %arg11[%c0_26, %c0_27] : memref<1x8xf32, #tpu.memory_space<vmem>>, vector<1x8xf32>
    %30 = vector.broadcast %29 : vector<1x8xf32> to vector<8x8xf32>
    %31 = arith.addf %28, %30 : vector<8x8xf32>
    %c0_28 = arith.constant 0 : index
    %c0_29 = arith.constant 0 : index
    %32 = vector.load %arg12[%c0_28, %c0_29] : memref<8x8xf32, #tpu.memory_space<vmem>>, vector<8x8xf32>
    tpu.vector_store %arg12[%c0_28, %c0_29], %31 {strides = array<i32>} : memref<8x8xf32, #tpu.memory_space<vmem>>, vector<8x8xf32>,
    return
  }
  func.func @transform_0(%arg0: i32) -> (i32, i32) {
    %c0_i32 = arith.constant 0 : i32
    %c0_i32_0 = arith.constant 0 : i32
    return %arg0, %c0_i32 : i32, i32
  }
  func.func @transform_1(%arg0: i32) -> (i32, i32) {
    %c0_i32 = arith.constant 0 : i32
    %c0_i32_0 = arith.constant 0 : i32
    return %arg0, %c0_i32 : i32, i32
  }
  func.func @transform_2(%arg0: i32) -> (i32, i32) {
    %c0_i32 = arith.constant 0 : i32
    %c0_i32_0 = arith.constant 0 : i32
    %c0_i32_1 = arith.constant 0 : i32
    return %c0_i32, %c0_i32_0 : i32, i32
  }
  func.func @transform_3(%arg0: i32) -> (i32, i32) {
    %c0_i32 = arith.constant 0 : i32
    %c0_i32_0 = arith.constant 0 : i32
    %c0_i32_1 = arith.constant 0 : i32
    return %c0_i32, %c0_i32_0 : i32, i32
  }
  func.func @transform_4(%arg0: i32) -> (i32, i32) {
    %c0_i32 = arith.constant 0 : i32
    %c0_i32_0 = arith.constant 0 : i32
    %c0_i32_1 = arith.constant 0 : i32
    return %c0_i32, %c0_i32_0 : i32, i32
  }
  func.func @transform_5(%arg0: i32) -> (i32, i32) {
    %c0_i32 = arith.constant 0 : i32
    %c0_i32_0 = arith.constant 0 : i32
    %c0_i32_1 = arith.constant 0 : i32
    return %c0_i32, %c0_i32_0 : i32, i32
  }
  func.func @transform_6(%arg0: i32) -> (i32, i32) {
    %c0_i32 = arith.constant 0 : i32
    %c0_i32_0 = arith.constant 0 : i32
    %c0_i32_1 = arith.constant 0 : i32
    return %c0_i32, %c0_i32_0 : i32, i32
  }
  func.func @transform_7(%arg0: i32) -> (i32, i32) {
    %c0_i32 = arith.constant 0 : i32
    %c0_i32_0 = arith.constant 0 : i32
    %c0_i32_1 = arith.constant 0 : i32
    return %c0_i32, %c0_i32_0 : i32, i32
  }
  func.func @transform_8(%arg0: i32) -> (i32, i32) {
    %c0_i32 = arith.constant 0 : i32
    %c0_i32_0 = arith.constant 0 : i32
    %c0_i32_1 = arith.constant 0 : i32
    return %c0_i32, %c0_i32_0 : i32, i32
  }
  func.func @transform_9(%arg0: i32) -> (i32, i32) {
    %c0_i32 = arith.constant 0 : i32
    %c0_i32_0 = arith.constant 0 : i32
    %c0_i32_1 = arith.constant 0 : i32
    return %c0_i32, %c0_i32_0 : i32, i32
  }
  func.func @transform_10(%arg0: i32) -> (i32, i32) {
    %c0_i32 = arith.constant 0 : i32
    %c0_i32_0 = arith.constant 0 : i32
    %c0_i32_1 = arith.constant 0 : i32
    return %c0_i32, %c0_i32_0 : i32, i32
  }
  func.func @transform_11(%arg0: i32) -> (i32, i32) {
    %c0_i32 = arith.constant 0 : i32
    %c0_i32_0 = arith.constant 0 : i32
    return %arg0, %c0_i32 : i32, i32
  }
}

</mosaic_0001>

<llo_original>
// kernel: tpu_custom_call.1
$region0: #{tpu_custom_call.1}
  #allocation0 [shape = 'u32[]', space=smem, size = 0x4, offset = 0x4, fixed_abs, tag = 'smem constant byte address 0x4 - core index']
  #allocation1 [shape = 'u32[144,128]{1,0:T(1,128)}', space=vmem, size = 0x12000, scoped, tag = 'internal scratch']
  %s0 = inlined_call_operand.vmem [shape: f32[8,4], index: 0, kind: input, shape index: {}]
  %s1 = inlined_call_operand.vmem [shape: f32[8,1024], index: 1, kind: input, shape index: {}]
  %s2 = inlined_call_operand.vmem [shape: f32[4,128], index: 2, kind: input, shape index: {}]
  %s3 = inlined_call_operand.vmem [shape: f32[1,128], index: 3, kind: input, shape index: {}]
  %s4 = inlined_call_operand.vmem [shape: f32[128,128], index: 4, kind: input, shape index: {}]
  %s5 = inlined_call_operand.vmem [shape: f32[1,128], index: 5, kind: input, shape index: {}]
  %s6 = inlined_call_operand.hbm [shape: bf16[1024,128], index: 6, kind: input, shape index: {}]
  %s7 = inlined_call_operand.vmem [shape: f32[1,128], index: 7, kind: input, shape index: {}]
  %s8 = inlined_call_operand.vmem [shape: f32[128,8], index: 8, kind: input, shape index: {}]
  %s9 = inlined_call_operand.vmem [shape: f32[128,8], index: 9, kind: input, shape index: {}]
  %s10 = inlined_call_operand.vmem [shape: f32[1,8], index: 10, kind: input, shape index: {}]
  %s11 = inlined_call_operand.hbm [shape: f32[8,8], index: 11, kind: output, shape index: {}]
  %s12 = sld [smem:[#allocation0]]
  $region58: #{tpu_custom_call.1} parent=0
    _
  %s14 = ssub.s32 1, %s12
  %s15 = scalar_select 0, %s14, %s12
  $region1: #{tpu_custom_call.1} parent=0
    #allocation2 [shape = 'u8[262144]{0}', space=vmem, size = 0x40000, scoped, tag = 'input window, operand 6, single buffered']
    #allocation3 [shape = 's32[1]{0}', space=sflag, size = 0x4, scoped, tag = 'scoped memory for tpu_custom_call.1']
    #allocation4 [shape = 's32[1]{0}', space=sflag, size = 0x4, scoped, tag = 'scoped memory for tpu_custom_call.1']
    #allocation5 [shape = 'u8[4096]{0}', space=vmem, size = 0x1000, scoped, tag = 'output window, operand 0, single buffered']
    %16 = vsyncpa [#allocation3], 0
    %17 = vsyncpa [#allocation4], 0
    // Predicated region
    $region2: #{tpu_custom_call.1} parent=1 // pred_check
      _
    $region3: #{tpu_custom_call.1} parent=1 // pred_check_branch
      %19 = sbr.rel (0) target = $region5
    $region4: #{tpu_custom_call.1} parent=1 // pred_region
      _
    $region5: #{tpu_custom_call.1} parent=1 // pred_fallthru
      _
    // Predicated region
    $region6: #{tpu_custom_call.1} parent=1 // pred_check
      _
    $region7: #{tpu_custom_call.1} parent=1 // pred_check_branch
      %21 = sbr.rel (0) target = $region9
    $region8: #{tpu_custom_call.1} parent=1 // pred_region
      _
    $region9: #{tpu_custom_call.1} parent=1 // pred_fallthru
      _
    // Predicated region
    $region10: #{tpu_custom_call.1} parent=1 // pred_check
      _
    $region11: #{tpu_custom_call.1} parent=1 // pred_check_branch
      %23 = sbr.rel (0) target = $region13
    $region12: #{tpu_custom_call.1} parent=1 // pred_region
      _
    $region13: #{tpu_custom_call.1} parent=1 // pred_fallthru
      _
    // Predicated region
    $region14: #{tpu_custom_call.1} parent=1 // pred_check
      _
    $region15: #{tpu_custom_call.1} parent=1 // pred_check_branch
      %25 = sbr.rel (0) target = $region17
    $region16: #{tpu_custom_call.1} parent=1 // pred_region
      _
    $region17: #{tpu_custom_call.1} parent=1 // pred_fallthru
      _
    // Predicated region
    $region18: #{tpu_custom_call.1} parent=1 // pred_check
      _
    $region19: #{tpu_custom_call.1} parent=1 // pred_check_branch
      %27 = sbr.rel (0) target = $region21
    $region20: #{tpu_custom_call.1} parent=1 // pred_region
      _
    $region21: #{tpu_custom_call.1} parent=1 // pred_fallthru
      _
    // Predicated region
    $region22: #{tpu_custom_call.1} parent=1 // pred_check
      _
    $region23: #{tpu_custom_call.1} parent=1 // pred_check_branch
      %29 = sbr.rel (0) target = $region25
    $region24: #{tpu_custom_call.1} parent=1 // pred_region
      _
    $region25: #{tpu_custom_call.1} parent=1 // pred_fallthru
      _
    // Predicated region
    $region26: #{tpu_custom_call.1} parent=1 // pred_check
      _
    $region27: #{tpu_custom_call.1} parent=1 // pred_check_branch
      %31 = sbr.rel (0) target = $region29
    $region28: #{tpu_custom_call.1} parent=1 // pred_region
      %s33 = ssub.s32 8192, 8192
      %34 = vsyncadd [#allocation3], %s33
      %s35 = sshll.u32 [#allocation2], 4
      %s36 = int_to_ptr.vmem [resolvable:$true] %s35
      %41 = dma.hbm_to_vmem [thread:$0]  %s6, 8192, %s36, [#allocation3], 64, 64, 4
    $region29: #{tpu_custom_call.1} parent=1 // pred_fallthru
      _
    // Predicated region
    $region30: #{tpu_custom_call.1} parent=1 // pred_check
      _
    $region31: #{tpu_custom_call.1} parent=1 // pred_check_branch
      %43 = sbr.rel (0) target = $region33
    $region32: #{tpu_custom_call.1} parent=1 // pred_region
      _
    $region33: #{tpu_custom_call.1} parent=1 // pred_fallthru
      _
    // Predicated region
    $region34: #{tpu_custom_call.1} parent=1 // pred_check
      _
    $region35: #{tpu_custom_call.1} parent=1 // pred_check_branch
      %45 = sbr.rel (0) target = $region37
    $region36: #{tpu_custom_call.1} parent=1 // pred_region
      _
    $region37: #{tpu_custom_call.1} parent=1 // pred_fallthru
      _
    // Predicated region
    $region38: #{tpu_custom_call.1} parent=1 // pred_check
      _
    $region39: #{tpu_custom_call.1} parent=1 // pred_check_branch
      %47 = sbr.rel (0) target = $region41
    $region40: #{tpu_custom_call.1} parent=1 // pred_region
      _
    $region41: #{tpu_custom_call.1} parent=1 // pred_fallthru
      _
    // Predicated region
    $region42: #{tpu_custom_call.1} parent=1 // pred_check
      _
    $region43: #{tpu_custom_call.1} parent=1 // pred_check_branch
      %49 = sbr.rel (0) target = $region45
    $region44: #{tpu_custom_call.1} parent=1 // pred_region
      _
    $region45: #{tpu_custom_call.1} parent=1 // pred_fallthru
      _
    // Predicated region
    $region46: #{tpu_custom_call.1} parent=1 // pred_check
      _
    $region47: #{tpu_custom_call.1} parent=1 // pred_check_branch
      %51 = sbr.rel (0) target = $region49
    $region48: #{tpu_custom_call.1} parent=1 // pred_region
      %52 = dma.done [#allocation3], 8192
    $region49: #{tpu_custom_call.1} parent=1 // pred_fallthru
      _
    %v54 = vld [vmem:[%s0] sm:$0xff]
    %v55 = vld [vmem:[%s2] sm:$0xf]
    %v56 = vld [vmem:[%s3] sm:$0x1]
    %v58 = vlaneseq
    %v59 = vshrl.u32 %v58, 7
    %v60 = vsub.s32 0, %v59
    %v61 = vrot.slane %v56, %v60
    %vm63 = vcmask 31744
    %v65 = vsel %vm63, %v54, 0
    %vm67 = vcmask 1043456
    %v69 = vsel %vm67, %v55, 0
    %71 = vmatprep.subr.mxu0 0.0
    %72 = vmatpush1.msra.mxu0 0.0
    %73 = vmatprep.subr.mxu0 0.0
    %74 = vmatpush1.msra.mxu0 0.0
    %75 = vmatprep.subr.mxu0 0.0
    %76 = vmatpush1.msra.mxu0 0.0
    %77 = vmatprep.subr.mxu0 0.0
    %78 = vmatpush1.msra.mxu0 0.0
    %79 = vmatprep.subr.mxu0 0.0
    %80 = vmatpush1.msra.mxu0 0.0
    %81 = vmatprep.subr.mxu0 0.0
    %82 = vmatpush1.msra.mxu0 0.0
    %83 = vmatprep.subr.mxu0 0.0
    %84 = vmatpush1.msra.mxu0 0.0
    %85 = vmatprep.subr.mxu0 0.0
    %86 = vmatpush1.msra.mxu0 0.0
    %87 = vmatprep.subr.mxu0 0.0
    %88 = vmatpush1.msra.mxu0 0.0
    %89 = vmatprep.subr.mxu0 0.0
    %90 = vmatpush1.msra.mxu0 0.0
    %91 = vmatprep.subr.mxu0 0.0
    %92 = vmatpush1.msra.mxu0 0.0
    %93 = vmatprep.subr.mxu0 0.0
    %94 = vmatpush1.msra.mxu0 0.0
    %95 = vmatprep.subr.mxu0 0.0
    %96 = vmatpush1.msra.mxu0 0.0
    %97 = vmatprep.subr.mxu0 0.0
    %98 = vmatpush1.msra.mxu0 0.0
    %99 = vmatprep.subr.mxu0 0.0
    %100 = vmatpush1.msra.mxu0 0.0
    %101 = vmatprep.subr.mxu0 0.0
    %102 = vmatpush1.msra.mxu0 %v69
    %103 = vmatprep.subr.mxu0 0.0
    %104 = vmatpush2.msra.mxu0 0.0
    %105 = vmatprep.subr.mxu0 0.0
    %106 = vmatpush2.msra.mxu0 0.0
    %107 = vmatprep.subr.mxu0 0.0
    %108 = vmatpush2.msra.mxu0 0.0
    %109 = vmatprep.subr.mxu0 0.0
    %110 = vmatpush2.msra.mxu0 0.0
    %111 = vmatprep.subr.mxu0 0.0
    %112 = vmatpush2.msra.mxu0 0.0
    %113 = vmatprep.subr.mxu0 0.0
    %114 = vmatpush2.msra.mxu0 0.0
    %115 = vmatprep.subr.mxu0 0.0
    %116 = vmatpush2.msra.mxu0 0.0
    %117 = vmatprep.subr.mxu0 0.0
    %118 = vmatpush2.msra.mxu0 0.0
    %119 = vmatprep.subr.mxu0 0.0
    %120 = vmatpush2.msra.mxu0 0.0
    %121 = vmatprep.subr.mxu0 0.0
    %122 = vmatpush2.msra.mxu0 0.0
    %123 = vmatprep.subr.mxu0 0.0
    %124 = vmatpush2.msra.mxu0 0.0
    %125 = vmatprep.subr.mxu0 0.0
    %126 = vmatpush2.msra.mxu0 0.0
    %127 = vmatprep.subr.mxu0 0.0
    %128 = vmatpush2.msra.mxu0 0.0
    %129 = vmatprep.subr.mxu0 0.0
    %130 = vmatpush2.msra.mxu0 0.0
    %131 = vmatprep.subr.mxu0 0.0
    %132 = vmatpush2.msra.mxu0 0.0
    %133 = vmatprep.subr.mxu0 0.0
    %134 = vmatpush2.msra.mxu0 0.0
    %135 = vmatprep.mubr.f32.mxu0 0.0
    %136 = vmatmul.mubr.f32.gmra.mxu0 %v65
    %v137 = vpop.f32.mrf.mxu0
    %v138 = vadd.f32 %v61, %v137
    %v139 = vpop.f32.mrf.mxu0
    %140 = vdwg.mxu0
    %v141 = vmax.f32 %v138, 0.0
    %v142 = vld [vmem:[%s4] sm:$0xff]
    %v143 = vld [vmem:[%s4 + $0x8] sm:$0xff]
    %v144 = vld [vmem:[%s4 + $0x10] sm:$0xff]
    %v145 = vld [vmem:[%s4 + $0x18] sm:$0xff]
    %v146 = vld [vmem:[%s4 + $0x20] sm:$0xff]
    %v147 = vld [vmem:[%s4 + $0x28] sm:$0xff]
    %v148 = vld [vmem:[%s4 + $0x30] sm:$0xff]
    %v149 = vld [vmem:[%s4 + $0x38] sm:$0xff]
    %v150 = vld [vmem:[%s4 + $0x40] sm:$0xff]
    %v151 = vld [vmem:[%s4 + $0x48] sm:$0xff]
    %v152 = vld [vmem:[%s4 + $0x50] sm:$0xff]
    %v153 = vld [vmem:[%s4 + $0x58] sm:$0xff]
    %v154 = vld [vmem:[%s4 + $0x60] sm:$0xff]
    %v155 = vld [vmem:[%s4 + $0x68] sm:$0xff]
    %v156 = vld [vmem:[%s4 + $0x70] sm:$0xff]
    %v157 = vld [vmem:[%s4 + $0x78] sm:$0xff]
    %v158 = vld [vmem:[%s5] sm:$0x1]
    %v160 = vlaneseq
    %v161 = vshrl.u32 %v160, 7
    %v162 = vsub.s32 0, %v161
    %v163 = vrot.slane %v158, %v162
    %165 = vmatprep.subr.mxu0 0.0
    %166 = vmatpush1.msra.mxu0 %v157
    %167 = vmatprep.subr.mxu0 0.0
    %168 = vmatpush1.msra.mxu0 %v156
    %169 = vmatprep.subr.mxu0 0.0
    %170 = vmatpush1.msra.mxu0 %v155
    %171 = vmatprep.subr.mxu0 0.0
    %172 = vmatpush1.msra.mxu0 %v154
    %173 = vmatprep.subr.mxu0 0.0
    %174 = vmatpush1.msra.mxu0 %v153
    %175 = vmatprep.subr.mxu0 0.0
    %176 = vmatpush1.msra.mxu0 %v152
    %177 = vmatprep.subr.mxu0 0.0
    %178 = vmatpush1.msra.mxu0 %v151
    %179 = vmatprep.subr.mxu0 0.0
    %180 = vmatpush1.msra.mxu0 %v150
    %181 = vmatprep.subr.mxu0 0.0
    %182 = vmatpush1.msra.mxu0 %v149
    %183 = vmatprep.subr.mxu0 0.0
    %184 = vmatpush1.msra.mxu0 %v148
    %185 = vmatprep.subr.mxu0 0.0
    %186 = vmatpush1.msra.mxu0 %v147
    %187 = vmatprep.subr.mxu0 0.0
    %188 = vmatpush1.msra.mxu0 %v146
    %189 = vmatprep.subr.mxu0 0.0
    %190 = vmatpush1.msra.mxu0 %v145
    %191 = vmatprep.subr.mxu0 0.0
    %192 = vmatpush1.msra.mxu0 %v144
    %193 = vmatprep.subr.mxu0 0.0
    %194 = vmatpush1.msra.mxu0 %v143
    %195 = vmatprep.subr.mxu0 0.0
    %196 = vmatpush1.msra.mxu0 %v142
    %197 = vmatprep.subr.mxu0 0.0
    %198 = vmatpush2.msra.mxu0 0.0
    %199 = vmatprep.subr.mxu0 0.0
    %200 = vmatpush2.msra.mxu0 0.0
    %201 = vmatprep.subr.mxu0 0.0
    %202 = vmatpush2.msra.mxu0 0.0
    %203 = vmatprep.subr.mxu0 0.0
    %204 = vmatpush2.msra.mxu0 0.0
    %205 = vmatprep.subr.mxu0 0.0
    %206 = vmatpush2.msra.mxu0 0.0
    %207 = vmatprep.subr.mxu0 0.0
    %208 = vmatpush2.msra.mxu0 0.0
    %209 = vmatprep.subr.mxu0 0.0
    %210 = vmatpush2.msra.mxu0 0.0
    %211 = vmatprep.subr.mxu0 0.0
    %212 = vmatpush2.msra.mxu0 0.0
    %213 = vmatprep.subr.mxu0 0.0
    %214 = vmatpush2.msra.mxu0 0.0
    %215 = vmatprep.subr.mxu0 0.0
    %216 = vmatpush2.msra.mxu0 0.0
    %217 = vmatprep.subr.mxu0 0.0
    %218 = vmatpush2.msra.mxu0 0.0
    %219 = vmatprep.subr.mxu0 0.0
    %220 = vmatpush2.msra.mxu0 0.0
    %221 = vmatprep.subr.mxu0 0.0
    %222 = vmatpush2.msra.mxu0 0.0
    %223 = vmatprep.subr.mxu0 0.0
    %224 = vmatpush2.msra.mxu0 0.0
    %225 = vmatprep.subr.mxu0 0.0
    %226 = vmatpush2.msra.mxu0 0.0
    %227 = vmatprep.subr.mxu0 0.0
    %228 = vmatpush2.msra.mxu0 0.0
    %229 = vmatprep.mubr.f32.mxu0 0.0
    %230 = vmatmul.mubr.f32.gmra.mxu0 %v141
    %v231 = vpop.f32.mrf.mxu0
    %v232 = vadd.f32 %v163, %v231
    %v233 = vpop.f32.mrf.mxu0
    %234 = vdwg.mxu0
    %v235 = vmax.f32 %v232, 0.0
    %v236 = vld [vmem:[%s1] sm:$0xff]
    %v237 = vld [vmem:[%s1 + $0x8] sm:$0xff]
    %v238 = vld [vmem:[%s1 + $0x10] sm:$0xff]
    %v239 = vld [vmem:[%s1 + $0x18] sm:$0xff]
    %v240 = vld [vmem:[%s1 + $0x20] sm:$0xff]
    %v241 = vld [vmem:[%s1 + $0x28] sm:$0xff]
    %v242 = vld [vmem:[%s1 + $0x30] sm:$0xff]
    %v243 = vld [vmem:[%s1 + $0x38] sm:$0xff]
    %v244 = vpack.c.bf16 %v236, %v236
    %v245 = vpack.c.bf16 %v237, %v237
    %v246 = vpack.c.bf16 %v238, %v238
    %v247 = vpack.c.bf16 %v239, %v239
    %v248 = vpack.c.bf16 %v240, %v240
    %v249 = vpack.c.bf16 %v241, %v241
    %v250 = vpack.c.bf16 %v242, %v242
    %v251 = vpack.c.bf16 %v243, %v243
    %v252 = vld [vmem:[#allocation2] sm:$0xf]
    %v253 = vld [vmem:[#allocation2 + $0x4] sm:$0xf]
    %v254 = vld [vmem:[#allocation2 + $0x8] sm:$0xf]
    %v255 = vld [vmem:[#allocation2 + $0xc] sm:$0xf]
    %v256 = vld [vmem:[#allocation2 + $0x10] sm:$0xf]
    %v257 = vld [vmem:[#allocation2 + $0x14] sm:$0xf]
    %v258 = vld [vmem:[#allocation2 + $0x18] sm:$0xf]
    %v259 = vld [vmem:[#allocation2 + $0x1c] sm:$0xf]
    %v260 = vld [vmem:[#allocation2 + $0x20] sm:$0xf]
    %v261 = vld [vmem:[#allocation2 + $0x24] sm:$0xf]
    %v262 = vld [vmem:[#allocation2 + $0x28] sm:$0xf]
    %v263 = vld [vmem:[#allocation2 + $0x2c] sm:$0xf]
    %v264 = vld [vmem:[#allocation2 + $0x30] sm:$0xf]
    %v265 = vld [vmem:[#allocation2 + $0x34] sm:$0xf]
    %v266 = vld [vmem:[#allocation2 + $0x38] sm:$0xf]
    %v267 = vld [vmem:[#allocation2 + $0x3c] sm:$0xf]
    %v268 = vld [vmem:[#allocation2 + $0x40] sm:$0xf]
    %v269 = vld [vmem:[#allocation2 + $0x44] sm:$0xf]
    %v270 = vld [vmem:[#allocation2 + $0x48] sm:$0xf]
    %v271 = vld [vmem:[#allocation2 + $0x4c] sm:$0xf]
    %v272 = vld [vmem:[#allocation2 + $0x50] sm:$0xf]
    %v273 = vld [vmem:[#allocation2 + $0x54] sm:$0xf]
    %v274 = vld [vmem:[#allocation2 + $0x58] sm:$0xf]
    %v275 = vld [vmem:[#allocation2 + $0x5c] sm:$0xf]
    %v276 = vld [vmem:[#allocation2 + $0x60] sm:$0xf]
    %v277 = vld [vmem:[#allocation2 + $0x64] sm:$0xf]
    %v278 = vld [vmem:[#allocation2 + $0x68] sm:$0xf]
    %v279 = vld [vmem:[#allocation2 + $0x6c] sm:$0xf]
    %v280 = vld [vmem:[#allocation2 + $0x70] sm:$0xf]
    %v281 = vld [vmem:[#allocation2 + $0x74] sm:$0xf]
    %v282 = vld [vmem:[#allocation2 + $0x78] sm:$0xf]
    %v283 = vld [vmem:[#allocation2 + $0x7c] sm:$0xf]
    %v284 = vld [vmem:[#allocation2 + $0x80] sm:$0xf]
    %v285 = vld [vmem:[#allocation2 + $0x84] sm:$0xf]
    %v286 = vld [vmem:[#allocation2 + $0x88] sm:$0xf]
    %v287 = vld [vmem:[#allocation2 + $0x8c] sm:$0xf]
    %v288 = vld [vmem:[#allocation2 + $0x90] sm:$0xf]
    %v289 = vld [vmem:[#allocation2 + $0x94] sm:$0xf]
    %v290 = vld [vmem:[#allocation2 + $0x98] sm:$0xf]
    %v291 = vld [vmem:[#allocation2 + $0x9c] sm:$0xf]
    %v292 = vld [vmem:[#allocation2 + $0xa0] sm:$0xf]
    %v293 = vld [vmem:[#allocation2 + $0xa4] sm:$0xf]
    %v294 = vld [vmem:[#allocation2 + $0xa8] sm:$0xf]
    %v295 = vld [vmem:[#allocation2 + $0xac] sm:$0xf]
    %v296 = vld [vmem:[#allocation2 + $0xb0] sm:$0xf]
    %v297 = vld [vmem:[#allocation2 + $0xb4] sm:$0xf]
    %v298 = vld [vmem:[#allocation2 + $0xb8] sm:$0xf]
    %v299 = vld [vmem:[#allocation2 + $0xbc] sm:$0xf]
    %v300 = vld [vmem:[#allocation2 + $0xc0] sm:$0xf]
    %v301 = vld [vmem:[#allocation2 + $0xc4] sm:$0xf]
    %v302 = vld [vmem:[#allocation2 + $0xc8] sm:$0xf]
    %v303 = vld [vmem:[#allocation2 + $0xcc] sm:$0xf]
    %v304 = vld [vmem:[#allocation2 + $0xd0] sm:$0xf]
    %v305 = vld [vmem:[#allocation2 + $0xd4] sm:$0xf]
    %v306 = vld [vmem:[#allocation2 + $0xd8] sm:$0xf]
    %v307 = vld [vmem:[#allocation2 + $0xdc] sm:$0xf]
    %v308 = vld [vmem:[#allocation2 + $0xe0] sm:$0xf]
    %v309 = vld [vmem:[#allocation2 + $0xe4] sm:$0xf]
    %v310 = vld [vmem:[#allocation2 + $0xe8] sm:$0xf]
    %v311 = vld [vmem:[#allocation2 + $0xec] sm:$0xf]
    %v312 = vld [vmem:[#allocation2 + $0xf0] sm:$0xf]
    %v313 = vld [vmem:[#allocation2 + $0xf4] sm:$0xf]
    %v314 = vld [vmem:[#allocation2 + $0xf8] sm:$0xf]
    %v315 = vld [vmem:[#allocation2 + $0xfc] sm:$0xf]
    %v316 = vld [vmem:[#allocation2 + $0x100] sm:$0xf]
    %v317 = vld [vmem:[#allocation2 + $0x104] sm:$0xf]
    %v318 = vld [vmem:[#allocation2 + $0x108] sm:$0xf]
    %v319 = vld [vmem:[#allocation2 + $0x10c] sm:$0xf]
    %v320 = vld [vmem:[#allocation2 + $0x110] sm:$0xf]
    %v321 = vld [vmem:[#allocation2 + $0x114] sm:$0xf]
    %v322 = vld [vmem:[#allocation2 + $0x118] sm:$0xf]
    %v323 = vld [vmem:[#allocation2 + $0x11c] sm:$0xf]
    %v324 = vld [vmem:[#allocation2 + $0x120] sm:$0xf]
    %v325 = vld [vmem:[#allocation2 + $0x124] sm:$0xf]
    %v326 = vld [vmem:[#allocation2 + $0x128] sm:$0xf]
    %v327 = vld [vmem:[#allocation2 + $0x12c] sm:$0xf]
    %v328 = vld [vmem:[#allocation2 + $0x130] sm:$0xf]
    %v329 = vld [vmem:[#allocation2 + $0x134] sm:$0xf]
    %v330 = vld [vmem:[#allocation2 + $0x138] sm:$0xf]
    %v331 = vld [vmem:[#allocation2 + $0x13c] sm:$0xf]
    %v332 = vld [vmem:[#allocation2 + $0x140] sm:$0xf]
    %v333 = vld [vmem:[#allocation2 + $0x144] sm:$0xf]
    %v334 = vld [vmem:[#allocation2 + $0x148] sm:$0xf]
    %v335 = vld [vmem:[#allocation2 + $0x14c] sm:$0xf]
    %v336 = vld [vmem:[#allocation2 + $0x150] sm:$0xf]
    %v337 = vld [vmem:[#allocation2 + $0x154] sm:$0xf]
    %v338 = vld [vmem:[#allocation2 + $0x158] sm:$0xf]
    %v339 = vld [vmem:[#allocation2 + $0x15c] sm:$0xf]
    %v340 = vld [vmem:[#allocation2 + $0x160] sm:$0xf]
    %v341 = vld [vmem:[#allocation2 + $0x164] sm:$0xf]
    %v342 = vld [vmem:[#allocation2 + $0x168] sm:$0xf]
    %v343 = vld [vmem:[#allocation2 + $0x16c] sm:$0xf]
    %v344 = vld [vmem:[#allocation2 + $0x170] sm:$0xf]
    %v345 = vld [vmem:[#allocation2 + $0x174] sm:$0xf]
    %v346 = vld [vmem:[#allocation2 + $0x178] sm:$0xf]
    %v347 = vld [vmem:[#allocation2 + $0x17c] sm:$0xf]
    %v348 = vld [vmem:[#allocation2 + $0x180] sm:$0xf]
    %v349 = vld [vmem:[#allocation2 + $0x184] sm:$0xf]
    %v350 = vld [vmem:[#allocation2 + $0x188] sm:$0xf]
    %v351 = vld [vmem:[#allocation2 + $0x18c] sm:$0xf]
    %v352 = vld [vmem:[#allocation2 + $0x190] sm:$0xf]
    %v353 = vld [vmem:[#allocation2 + $0x194] sm:$0xf]
    %v354 = vld [vmem:[#allocation2 + $0x198] sm:$0xf]
    %v355 = vld [vmem:[#allocation2 + $0x19c] sm:$0xf]
    %v356 = vld [vmem:[#allocation2 + $0x1a0] sm:$0xf]
    %v357 = vld [vmem:[#allocation2 + $0x1a4] sm:$0xf]
    %v358 = vld [vmem:[#allocation2 + $0x1a8] sm:$0xf]
    %v359 = vld [vmem:[#allocation2 + $0x1ac] sm:$0xf]
    %v360 = vld [vmem:[#allocation2 + $0x1b0] sm:$0xf]
    %v361 = vld [vmem:[#allocation2 + $0x1b4] sm:$0xf]
    %v362 = vld [vmem:[#allocation2 + $0x1b8] sm:$0xf]
    %v363 = vld [vmem:[#allocation2 + $0x1bc] sm:$0xf]
    %v364 = vld [vmem:[#allocation2 + $0x1c0] sm:$0xf]
    %v365 = vld [vmem:[#allocation2 + $0x1c4] sm:$0xf]
    %v366 = vld [vmem:[#allocation2 + $0x1c8] sm:$0xf]
    %v367 = vld [vmem:[#allocation2 + $0x1cc] sm:$0xf]
    %v368 = vld [vmem:[#allocation2 + $0x1d0] sm:$0xf]
    %v369 = vld [vmem:[#allocation2 + $0x1d4] sm:$0xf]
    %v370 = vld [vmem:[#allocation2 + $0x1d8] sm:$0xf]
    %v371 = vld [vmem:[#allocation2 + $0x1dc] sm:$0xf]
    %v372 = vld [vmem:[#allocation2 + $0x1e0] sm:$0xf]
    %v373 = vld [vmem:[#allocation2 + $0x1e4] sm:$0xf]
    %v374 = vld [vmem:[#allocation2 + $0x1e8] sm:$0xf]
    %v375 = vld [vmem:[#allocation2 + $0x1ec] sm:$0xf]
    %v376 = vld [vmem:[#allocation2 + $0x1f0] sm:$0xf]
    %v377 = vld [vmem:[#allocation2 + $0x1f4] sm:$0xf]
    %v378 = vld [vmem:[#allocation2 + $0x1f8] sm:$0xf]
    %v379 = vld [vmem:[#allocation2 + $0x1fc] sm:$0xf]
    %v380 = vld [vmem:[%s7] sm:$0x1]
    %v382 = vlaneseq
    %v383 = vshrl.u32 %v382, 7
    %v384 = vsub.s32 0, %v383
    %v385 = vrot.slane %v380, %v384
    %v515 = vunpack.c.l.b16 %v252
    %v516 = vunpack.c.l.b16 %v253
    %v517 = vunpack.c.l.b16 %v254
    %v518 = vunpack.c.l.b16 %v255
    %v519 = vunpack.c.l.b16 %v256
    %v520 = vunpack.c.l.b16 %v257
    %v521 = vunpack.c.l.b16 %v258
    %v522 = vunpack.c.l.b16 %v259
    %v523 = vunpack.c.l.b16 %v260
    %v524 = vunpack.c.l.b16 %v261
    %v525 = vunpack.c.l.b16 %v262
    %v526 = vunpack.c.l.b16 %v263
    %v527 = vunpack.c.l.b16 %v264
    %v528 = vunpack.c.l.b16 %v265
    %v529 = vunpack.c.l.b16 %v266
    %v530 = vunpack.c.l.b16 %v267
    %v531 = vunpack.c.l.b16 %v268
    %v532 = vunpack.c.l.b16 %v269
    %v533 = vunpack.c.l.b16 %v270
    %v534 = vunpack.c.l.b16 %v271
    %v535 = vunpack.c.l.b16 %v272
    %v536 = vunpack.c.l.b16 %v273
    %v537 = vunpack.c.l.b16 %v274
    %v538 = vunpack.c.l.b16 %v275
    %v539 = vunpack.c.l.b16 %v276
    %v540 = vunpack.c.l.b16 %v277
    %v541 = vunpack.c.l.b16 %v278
    %v542 = vunpack.c.l.b16 %v279
    %v543 = vunpack.c.l.b16 %v280
    %v544 = vunpack.c.l.b16 %v281
    %v545 = vunpack.c.l.b16 %v282
    %v546 = vunpack.c.l.b16 %v283
    %v547 = vunpack.c.l.b16 %v284
    %v548 = vunpack.c.l.b16 %v285
    %v549 = vunpack.c.l.b16 %v286
    %v550 = vunpack.c.l.b16 %v287
    %v551 = vunpack.c.l.b16 %v288
    %v552 = vunpack.c.l.b16 %v289
    %v553 = vunpack.c.l.b16 %v290
    %v554 = vunpack.c.l.b16 %v291
    %v555 = vunpack.c.l.b16 %v292
    %v556 = vunpack.c.l.b16 %v293
    %v557 = vunpack.c.l.b16 %v294
    %v558 = vunpack.c.l.b16 %v295
    %v559 = vunpack.c.l.b16 %v296
    %v560 = vunpack.c.l.b16 %v297
    %v561 = vunpack.c.l.b16 %v298
    %v562 = vunpack.c.l.b16 %v299
    %v563 = vunpack.c.l.b16 %v300
    %v564 = vunpack.c.l.b16 %v301
    %v565 = vunpack.c.l.b16 %v302
    %v566 = vunpack.c.l.b16 %v303
    %v567 = vunpack.c.l.b16 %v304
    %v568 = vunpack.c.l.b16 %v305
    %v569 = vunpack.c.l.b16 %v306
    %v570 = vunpack.c.l.b16 %v307
    %v571 = vunpack.c.l.b16 %v308
    %v572 = vunpack.c.l.b16 %v309
    %v573 = vunpack.c.l.b16 %v310
    %v574 = vunpack.c.l.b16 %v311
    %v575 = vunpack.c.l.b16 %v312
    %v576 = vunpack.c.l.b16 %v313
    %v577 = vunpack.c.l.b16 %v314
    %v578 = vunpack.c.l.b16 %v315
    %v579 = vunpack.c.l.b16 %v316
    %v580 = vunpack.c.l.b16 %v317
    %v581 = vunpack.c.l.b16 %v318
    %v582 = vunpack.c.l.b16 %v319
    %v583 = vunpack.c.l.b16 %v320
    %v584 = vunpack.c.l.b16 %v321
    %v585 = vunpack.c.l.b16 %v322
    %v586 = vunpack.c.l.b16 %v323
    %v587 = vunpack.c.l.b16 %v324
    %v588 = vunpack.c.l.b16 %v325
    %v589 = vunpack.c.l.b16 %v326
    %v590 = vunpack.c.l.b16 %v327
    %v591 = vunpack.c.l.b16 %v328
    %v592 = vunpack.c.l.b16 %v329
    %v593 = vunpack.c.l.b16 %v330
    %v594 = vunpack.c.l.b16 %v331
    %v595 = vunpack.c.l.b16 %v332
    %v596 = vunpack.c.l.b16 %v333
    %v597 = vunpack.c.l.b16 %v334
    %v598 = vunpack.c.l.b16 %v335
    %v599 = vunpack.c.l.b16 %v336
    %v600 = vunpack.c.l.b16 %v337
    %v601 = vunpack.c.l.b16 %v338
    %v602 = vunpack.c.l.b16 %v339
    %v603 = vunpack.c.l.b16 %v340
    %v604 = vunpack.c.l.b16 %v341
    %v605 = vunpack.c.l.b16 %v342
    %v606 = vunpack.c.l.b16 %v343
    %v607 = vunpack.c.l.b16 %v344
    %v608 = vunpack.c.l.b16 %v345
    %v609 = vunpack.c.l.b16 %v346
    %v610 = vunpack.c.l.b16 %v347
    %v611 = vunpack.c.l.b16 %v348
    %v612 = vunpack.c.l.b16 %v349
    %v613 = vunpack.c.l.b16 %v350
    %v614 = vunpack.c.l.b16 %v351
    %v615 = vunpack.c.l.b16 %v352
    %v616 = vunpack.c.l.b16 %v353
    %v617 = vunpack.c.l.b16 %v354
    %v618 = vunpack.c.l.b16 %v355
    %v619 = vunpack.c.l.b16 %v356
    %v620 = vunpack.c.l.b16 %v357
    %v621 = vunpack.c.l.b16 %v358
    %v622 = vunpack.c.l.b16 %v359
    %v623 = vunpack.c.l.b16 %v360
    %v624 = vunpack.c.l.b16 %v361
    %v625 = vunpack.c.l.b16 %v362
    %v626 = vunpack.c.l.b16 %v363
    %v627 = vunpack.c.l.b16 %v364
    %v628 = vunpack.c.l.b16 %v365
    %v629 = vunpack.c.l.b16 %v366
    %v630 = vunpack.c.l.b16 %v367
    %v631 = vunpack.c.l.b16 %v368
    %v632 = vunpack.c.l.b16 %v369
    %v633 = vunpack.c.l.b16 %v370
    %v634 = vunpack.c.l.b16 %v371
    %v635 = vunpack.c.l.b16 %v372
    %v636 = vunpack.c.l.b16 %v373
    %v637 = vunpack.c.l.b16 %v374
    %v638 = vunpack.c.l.b16 %v375
    %v639 = vunpack.c.l.b16 %v376
    %v640 = vunpack.c.l.b16 %v377
    %v641 = vunpack.c.l.b16 %v378
    %v642 = vunpack.c.l.b16 %v379
    %v643 = vpack.c.b16 %v516, %v515
    %v644 = vpack.c.b16 %v518, %v517
    %v645 = vpack.c.b16 %v520, %v519
    %v646 = vpack.c.b16 %v522, %v521
    %v647 = vpack.c.b16 %v524, %v523
    %v648 = vpack.c.b16 %v526, %v525
    %v649 = vpack.c.b16 %v528, %v527
    %v650 = vpack.c.b16 %v530, %v529
    %v651 = vpack.c.b16 %v532, %v531
    %v652 = vpack.c.b16 %v534, %v533
    %v653 = vpack.c.b16 %v536, %v535
    %v654 = vpack.c.b16 %v538, %v537
    %v655 = vpack.c.b16 %v540, %v539
    %v656 = vpack.c.b16 %v542, %v541
    %v657 = vpack.c.b16 %v544, %v543
    %v658 = vpack.c.b16 %v546, %v545
    %v659 = vpack.c.b16 %v548, %v547
    %v660 = vpack.c.b16 %v550, %v549
    %v661 = vpack.c.b16 %v552, %v551
    %v662 = vpack.c.b16 %v554, %v553
    %v663 = vpack.c.b16 %v556, %v555
    %v664 = vpack.c.b16 %v558, %v557
    %v665 = vpack.c.b16 %v560, %v559
    %v666 = vpack.c.b16 %v562, %v561
    %v667 = vpack.c.b16 %v564, %v563
    %v668 = vpack.c.b16 %v566, %v565
    %v669 = vpack.c.b16 %v568, %v567
    %v670 = vpack.c.b16 %v570, %v569
    %v671 = vpack.c.b16 %v572, %v571
    %v672 = vpack.c.b16 %v574, %v573
    %v673 = vpack.c.b16 %v576, %v575
    %v674 = vpack.c.b16 %v578, %v577
    %v675 = vpack.c.b16 %v580, %v579
    %v676 = vpack.c.b16 %v582, %v581
    %v677 = vpack.c.b16 %v584, %v583
    %v678 = vpack.c.b16 %v586, %v585
    %v679 = vpack.c.b16 %v588, %v587
    %v680 = vpack.c.b16 %v590, %v589
    %v681 = vpack.c.b16 %v592, %v591
    %v682 = vpack.c.b16 %v594, %v593
    %v683 = vpack.c.b16 %v596, %v595
    %v684 = vpack.c.b16 %v598, %v597
    %v685 = vpack.c.b16 %v600, %v599
    %v686 = vpack.c.b16 %v602, %v601
    %v687 = vpack.c.b16 %v604, %v603
    %v688 = vpack.c.b16 %v606, %v605
    %v689 = vpack.c.b16 %v608, %v607
    %v690 = vpack.c.b16 %v610, %v609
    %v691 = vpack.c.b16 %v612, %v611
    %v692 = vpack.c.b16 %v614, %v613
    %v693 = vpack.c.b16 %v616, %v615
    %v694 = vpack.c.b16 %v618, %v617
    %v695 = vpack.c.b16 %v620, %v619
    %v696 = vpack.c.b16 %v622, %v621
    %v697 = vpack.c.b16 %v624, %v623
    %v698 = vpack.c.b16 %v626, %v625
    %v699 = vpack.c.b16 %v628, %v627
    %v700 = vpack.c.b16 %v630, %v629
    %v701 = vpack.c.b16 %v632, %v631
    %v702 = vpack.c.b16 %v634, %v633
    %v703 = vpack.c.b16 %v636, %v635
    %v704 = vpack.c.b16 %v638, %v637
    %v705 = vpack.c.b16 %v640, %v639
    %v706 = vpack.c.b16 %v642, %v641
    %771 = vmatprep.subr.bf16.mxu0 0
    %772 = vmatpush1.bf16.msra.mxu0 %v650
    %773 = vmatprep.subr.bf16.mxu0 0
    %774 = vmatpush1.bf16.msra.mxu0 %v649
    %775 = vmatprep.subr.bf16.mxu0 0
    %776 = vmatpush1.bf16.msra.mxu0 %v648
    %777 = vmatprep.subr.bf16.mxu0 0
    %778 = vmatpush1.bf16.msra.mxu0 %v647
    %779 = vmatprep.subr.bf16.mxu0 0
    %780 = vmatpush1.bf16.msra.mxu0 %v646
    %781 = vmatprep.subr.bf16.mxu0 0
    %782 = vmatpush1.bf16.msra.mxu0 %v645
    %783 = vmatprep.subr.bf16.mxu0 0
    %784 = vmatpush1.bf16.msra.mxu0 %v644
    %785 = vmatprep.subr.bf16.mxu0 0
    %786 = vmatpush1.bf16.msra.mxu0 %v643
    %787 = vmatprep.subr.bf16.mxu0 0
    %788 = vmatpush2.bf16.msra.mxu0 %v658
    %789 = vmatprep.subr.bf16.mxu0 0
    %790 = vmatpush2.bf16.msra.mxu0 %v657
    %791 = vmatprep.subr.bf16.mxu0 0
    %792 = vmatpush2.bf16.msra.mxu0 %v656
    %793 = vmatprep.subr.bf16.mxu0 0
    %794 = vmatpush2.bf16.msra.mxu0 %v655
    %795 = vmatprep.subr.bf16.mxu0 0
    %796 = vmatpush2.bf16.msra.mxu0 %v654
    %797 = vmatprep.subr.bf16.mxu0 0
    %798 = vmatpush2.bf16.msra.mxu0 %v653
    %799 = vmatprep.subr.bf16.mxu0 0
    %800 = vmatpush2.bf16.msra.mxu0 %v652
    %801 = vmatprep.subr.bf16.mxu0 0
    %802 = vmatpush2.bf16.msra.mxu0 %v651
    %803 = vmatprep.mubr.bf16.mxu0 %v245
    %804 = vmatmul.mubr.bf16.gmra.mxu0 %v244
    %v805 = vpop.f32.mrf.mxu0
    %v806 = vadd.f32 %v385, %v805
    %v807 = vpop.f32.mrf.mxu0
    %v808 = vpop.f32.mrf.mxu0
    %v809 = vpop.f32.mrf.mxu0
    %810 = vdwg.mxu0
    %811 = vmatprep.subr.bf16.mxu0 0
    %812 = vmatpush1.bf16.msra.mxu0 %v666
    %813 = vmatprep.subr.bf16.mxu0 0
    %814 = vmatpush1.bf16.msra.mxu0 %v665
    %815 = vmatprep.subr.bf16.mxu0 0
    %816 = vmatpush1.bf16.msra.mxu0 %v664
    %817 = vmatprep.subr.bf16.mxu0 0
    %818 = vmatpush1.bf16.msra.mxu0 %v663
    %819 = vmatprep.subr.bf16.mxu0 0
    %820 = vmatpush1.bf16.msra.mxu0 %v662
    %821 = vmatprep.subr.bf16.mxu0 0
    %822 = vmatpush1.bf16.msra.mxu0 %v661
    %823 = vmatprep.subr.bf16.mxu0 0
    %824 = vmatpush1.bf16.msra.mxu0 %v660
    %825 = vmatprep.subr.bf16.mxu0 0
    %826 = vmatpush1.bf16.msra.mxu0 %v659
    %827 = vmatprep.subr.bf16.mxu0 0
    %828 = vmatpush2.bf16.msra.mxu0 %v674
    %829 = vmatprep.subr.bf16.mxu0 0
    %830 = vmatpush2.bf16.msra.mxu0 %v673
    %831 = vmatprep.subr.bf16.mxu0 0
    %832 = vmatpush2.bf16.msra.mxu0 %v672
    %833 = vmatprep.subr.bf16.mxu0 0
    %834 = vmatpush2.bf16.msra.mxu0 %v671
    %835 = vmatprep.subr.bf16.mxu0 0
    %836 = vmatpush2.bf16.msra.mxu0 %v670
    %837 = vmatprep.subr.bf16.mxu0 0
    %838 = vmatpush2.bf16.msra.mxu0 %v669
    %839 = vmatprep.subr.bf16.mxu0 0
    %840 = vmatpush2.bf16.msra.mxu0 %v668
    %841 = vmatprep.subr.bf16.mxu0 0
    %842 = vmatpush2.bf16.msra.mxu0 %v667
    %843 = vmatprep.mubr.bf16.mxu0 %v247
    %844 = vmatmul.mubr.bf16.gmra.mxu0 %v246
    %v845 = vpop.f32.mrf.mxu0
    %v846 = vadd.f32 %v806, %v845
    %v847 = vpop.f32.mrf.mxu0
    %v848 = vpop.f32.mrf.mxu0
    %v849 = vpop.f32.mrf.mxu0
    %850 = vdwg.mxu0
    %851 = vmatprep.subr.bf16.mxu0 0
    %852 = vmatpush1.bf16.msra.mxu0 %v682
    %853 = vmatprep.subr.bf16.mxu0 0
    %854 = vmatpush1.bf16.msra.mxu0 %v681
    %855 = vmatprep.subr.bf16.mxu0 0
    %856 = vmatpush1.bf16.msra.mxu0 %v680
    %857 = vmatprep.subr.bf16.mxu0 0
    %858 = vmatpush1.bf16.msra.mxu0 %v679
    %859 = vmatprep.subr.bf16.mxu0 0
    %860 = vmatpush1.bf16.msra.mxu0 %v678
    %861 = vmatprep.subr.bf16.mxu0 0
    %862 = vmatpush1.bf16.msra.mxu0 %v677
    %863 = vmatprep.subr.bf16.mxu0 0
    %864 = vmatpush1.bf16.msra.mxu0 %v676
    %865 = vmatprep.subr.bf16.mxu0 0
    %866 = vmatpush1.bf16.msra.mxu0 %v675
    %867 = vmatprep.subr.bf16.mxu0 0
    %868 = vmatpush2.bf16.msra.mxu0 %v690
    %869 = vmatprep.subr.bf16.mxu0 0
    %870 = vmatpush2.bf16.msra.mxu0 %v689
    %871 = vmatprep.subr.bf16.mxu0 0
    %872 = vmatpush2.bf16.msra.mxu0 %v688
    %873 = vmatprep.subr.bf16.mxu0 0
    %874 = vmatpush2.bf16.msra.mxu0 %v687
    %875 = vmatprep.subr.bf16.mxu0 0
    %876 = vmatpush2.bf16.msra.mxu0 %v686
    %877 = vmatprep.subr.bf16.mxu0 0
    %878 = vmatpush2.bf16.msra.mxu0 %v685
    %879 = vmatprep.subr.bf16.mxu0 0
    %880 = vmatpush2.bf16.msra.mxu0 %v684
    %881 = vmatprep.subr.bf16.mxu0 0
    %882 = vmatpush2.bf16.msra.mxu0 %v683
    %883 = vmatprep.mubr.bf16.mxu0 %v249
    %884 = vmatmul.mubr.bf16.gmra.mxu0 %v248
    %v885 = vpop.f32.mrf.mxu0
    %v886 = vadd.f32 %v846, %v885
    %v887 = vpop.f32.mrf.mxu0
    %v888 = vpop.f32.mrf.mxu0
    %v889 = vpop.f32.mrf.mxu0
    %890 = vdwg.mxu0
    %891 = vmatprep.subr.bf16.mxu0 0
    %892 = vmatpush1.bf16.msra.mxu0 %v698
    %893 = vmatprep.subr.bf16.mxu0 0
    %894 = vmatpush1.bf16.msra.mxu0 %v697
    %895 = vmatprep.subr.bf16.mxu0 0
    %896 = vmatpush1.bf16.msra.mxu0 %v696
    %897 = vmatprep.subr.bf16.mxu0 0
    %898 = vmatpush1.bf16.msra.mxu0 %v695
    %899 = vmatprep.subr.bf16.mxu0 0
    %900 = vmatpush1.bf16.msra.mxu0 %v694
    %901 = vmatprep.subr.bf16.mxu0 0
    %902 = vmatpush1.bf16.msra.mxu0 %v693
    %903 = vmatprep.subr.bf16.mxu0 0
    %904 = vmatpush1.bf16.msra.mxu0 %v692
    %905 = vmatprep.subr.bf16.mxu0 0
    %906 = vmatpush1.bf16.msra.mxu0 %v691
    %907 = vmatprep.subr.bf16.mxu0 0
    %908 = vmatpush2.bf16.msra.mxu0 %v706
    %909 = vmatprep.subr.bf16.mxu0 0
    %910 = vmatpush2.bf16.msra.mxu0 %v705
    %911 = vmatprep.subr.bf16.mxu0 0
    %912 = vmatpush2.bf16.msra.mxu0 %v704
    %913 = vmatprep.subr.bf16.mxu0 0
    %914 = vmatpush2.bf16.msra.mxu0 %v703
    %915 = vmatprep.subr.bf16.mxu0 0
    %916 = vmatpush2.bf16.msra.mxu0 %v702
    %917 = vmatprep.subr.bf16.mxu0 0
    %918 = vmatpush2.bf16.msra.mxu0 %v701
    %919 = vmatprep.subr.bf16.mxu0 0
    %920 = vmatpush2.bf16.msra.mxu0 %v700
    %921 = vmatprep.subr.bf16.mxu0 0
    %922 = vmatpush2.bf16.msra.mxu0 %v699
    %923 = vmatprep.mubr.bf16.mxu0 %v251
    %924 = vmatmul.mubr.bf16.gmra.mxu0 %v250
    %v925 = vpop.f32.mrf.mxu0
    %v926 = vadd.f32 %v886, %v925
    %v927 = vpop.f32.mrf.mxu0
    %v928 = vpop.f32.mrf.mxu0
    %v929 = vpop.f32.mrf.mxu0
    %930 = vdwg.mxu0
    %v931 = vmax.f32 %v926, 0.0
    %v932 = vld [vmem:[%s8] sm:$0xff]
    %v933 = vld [vmem:[%s8 + $0x8] sm:$0xff]
    %v934 = vld [vmem:[%s8 + $0x10] sm:$0xff]
    %v935 = vld [vmem:[%s8 + $0x18] sm:$0xff]
    %v936 = vld [vmem:[%s8 + $0x20] sm:$0xff]
    %v937 = vld [vmem:[%s8 + $0x28] sm:$0xff]
    %v938 = vld [vmem:[%s8 + $0x30] sm:$0xff]
    %v939 = vld [vmem:[%s8 + $0x38] sm:$0xff]
    %v940 = vld [vmem:[%s8 + $0x40] sm:$0xff]
    %v941 = vld [vmem:[%s8 + $0x48] sm:$0xff]
    %v942 = vld [vmem:[%s8 + $0x50] sm:$0xff]
    %v943 = vld [vmem:[%s8 + $0x58] sm:$0xff]
    %v944 = vld [vmem:[%s8 + $0x60] sm:$0xff]
    %v945 = vld [vmem:[%s8 + $0x68] sm:$0xff]
    %v946 = vld [vmem:[%s8 + $0x70] sm:$0xff]
    %v947 = vld [vmem:[%s8 + $0x78] sm:$0xff]
    %v948 = vld [vmem:[%s9] sm:$0xff]
    %v949 = vld [vmem:[%s9 + $0x8] sm:$0xff]
    %v950 = vld [vmem:[%s9 + $0x10] sm:$0xff]
    %v951 = vld [vmem:[%s9 + $0x18] sm:$0xff]
    %v952 = vld [vmem:[%s9 + $0x20] sm:$0xff]
    %v953 = vld [vmem:[%s9 + $0x28] sm:$0xff]
    %v954 = vld [vmem:[%s9 + $0x30] sm:$0xff]
    %v955 = vld [vmem:[%s9 + $0x38] sm:$0xff]
    %v956 = vld [vmem:[%s9 + $0x40] sm:$0xff]
    %v957 = vld [vmem:[%s9 + $0x48] sm:$0xff]
    %v958 = vld [vmem:[%s9 + $0x50] sm:$0xff]
    %v959 = vld [vmem:[%s9 + $0x58] sm:$0xff]
    %v960 = vld [vmem:[%s9 + $0x60] sm:$0xff]
    %v961 = vld [vmem:[%s9 + $0x68] sm:$0xff]
    %v962 = vld [vmem:[%s9 + $0x70] sm:$0xff]
    %v963 = vld [vmem:[%s9 + $0x78] sm:$0xff]
    %964 = vmatprep.subr.mxu0 0.0
    %965 = vmatpush1.msra.mxu0 %v963
    %966 = vmatprep.subr.mxu0 0.0
    %967 = vmatpush1.msra.mxu0 %v962
    %968 = vmatprep.subr.mxu0 0.0
    %969 = vmatpush1.msra.mxu0 %v961
    %970 = vmatprep.subr.mxu0 0.0
    %971 = vmatpush1.msra.mxu0 %v960
    %972 = vmatprep.subr.mxu0 0.0
    %973 = vmatpush1.msra.mxu0 %v959
    %974 = vmatprep.subr.mxu0 0.0
    %975 = vmatpush1.msra.mxu0 %v958
    %976 = vmatprep.subr.mxu0 0.0
    %977 = vmatpush1.msra.mxu0 %v957
    %978 = vmatprep.subr.mxu0 0.0
    %979 = vmatpush1.msra.mxu0 %v956
    %980 = vmatprep.subr.mxu0 0.0
    %981 = vmatpush1.msra.mxu0 %v955
    %982 = vmatprep.subr.mxu0 0.0
    %983 = vmatpush1.msra.mxu0 %v954
    %984 = vmatprep.subr.mxu0 0.0
    %985 = vmatpush1.msra.mxu0 %v953
    %986 = vmatprep.subr.mxu0 0.0
    %987 = vmatpush1.msra.mxu0 %v952
    %988 = vmatprep.subr.mxu0 0.0
    %989 = vmatpush1.msra.mxu0 %v951
    %990 = vmatprep.subr.mxu0 0.0
    %991 = vmatpush1.msra.mxu0 %v950
    %992 = vmatprep.subr.mxu0 0.0
    %993 = vmatpush1.msra.mxu0 %v949
    %994 = vmatprep.subr.mxu0 0.0
    %995 = vmatpush1.msra.mxu0 %v948
    %996 = vmatprep.subr.mxu0 0.0
    %997 = vmatpush2.msra.mxu0 0.0
    %998 = vmatprep.subr.mxu0 0.0
    %999 = vmatpush2.msra.mxu0 0.0
    %1000 = vmatprep.subr.mxu0 0.0
    %1001 = vmatpush2.msra.mxu0 0.0
    %1002 = vmatprep.subr.mxu0 0.0
    %1003 = vmatpush2.msra.mxu0 0.0
    %1004 = vmatprep.subr.mxu0 0.0
    %1005 = vmatpush2.msra.mxu0 0.0
    %1006 = vmatprep.subr.mxu0 0.0
    %1007 = vmatpush2.msra.mxu0 0.0
    %1008 = vmatprep.subr.mxu0 0.0
    %1009 = vmatpush2.msra.mxu0 0.0
    %1010 = vmatprep.subr.mxu0 0.0
    %1011 = vmatpush2.msra.mxu0 0.0
    %1012 = vmatprep.subr.mxu0 0.0
    %1013 = vmatpush2.msra.mxu0 0.0
    %1014 = vmatprep.subr.mxu0 0.0
    %1015 = vmatpush2.msra.mxu0 0.0
    %1016 = vmatprep.subr.mxu0 0.0
    %1017 = vmatpush2.msra.mxu0 0.0
    %1018 = vmatprep.subr.mxu0 0.0
    %1019 = vmatpush2.msra.mxu0 0.0
    %1020 = vmatprep.subr.mxu0 0.0
    %1021 = vmatpush2.msra.mxu0 0.0
    %1022 = vmatprep.subr.mxu0 0.0
    %1023 = vmatpush2.msra.mxu0 0.0
    %1024 = vmatprep.subr.mxu0 0.0
    %1025 = vmatpush2.msra.mxu0 0.0
    %1026 = vmatprep.subr.mxu0 0.0
    %1027 = vmatpush2.msra.mxu0 0.0
    %1028 = vmatprep.mubr.f32.mxu0 0.0
    %1029 = vmatmul.mubr.f32.gmra.mxu0 %v931
    %v1030 = vpop.f32.mrf.mxu0
    %v1031 = vadd.f32 0.0, %v1030
    %v1032 = vpop.f32.mrf.mxu0
    %1033 = vdwg.mxu0
    %1034 = vmatprep.subr.mxu0 0.0
    %1035 = vmatpush1.msra.mxu0 %v947
    %1036 = vmatprep.subr.mxu0 0.0
    %1037 = vmatpush1.msra.mxu0 %v946
    %1038 = vmatprep.subr.mxu0 0.0
    %1039 = vmatpush1.msra.mxu0 %v945
    %1040 = vmatprep.subr.mxu0 0.0
    %1041 = vmatpush1.msra.mxu0 %v944
    %1042 = vmatprep.subr.mxu0 0.0
    %1043 = vmatpush1.msra.mxu0 %v943
    %1044 = vmatprep.subr.mxu0 0.0
    %1045 = vmatpush1.msra.mxu0 %v942
    %1046 = vmatprep.subr.mxu0 0.0
    %1047 = vmatpush1.msra.mxu0 %v941
    %1048 = vmatprep.subr.mxu0 0.0
    %1049 = vmatpush1.msra.mxu0 %v940
    %1050 = vmatprep.subr.mxu0 0.0
    %1051 = vmatpush1.msra.mxu0 %v939
    %1052 = vmatprep.subr.mxu0 0.0
    %1053 = vmatpush1.msra.mxu0 %v938
    %1054 = vmatprep.subr.mxu0 0.0
    %1055 = vmatpush1.msra.mxu0 %v937
    %1056 = vmatprep.subr.mxu0 0.0
    %1057 = vmatpush1.msra.mxu0 %v936
    %1058 = vmatprep.subr.mxu0 0.0
    %1059 = vmatpush1.msra.mxu0 %v935
    %1060 = vmatprep.subr.mxu0 0.0
    %1061 = vmatpush1.msra.mxu0 %v934
    %1062 = vmatprep.subr.mxu0 0.0
    %1063 = vmatpush1.msra.mxu0 %v933
    %1064 = vmatprep.subr.mxu0 0.0
    %1065 = vmatpush1.msra.mxu0 %v932
    %1066 = vmatprep.subr.mxu0 0.0
    %1067 = vmatpush2.msra.mxu0 0.0
    %1068 = vmatprep.subr.mxu0 0.0
    %1069 = vmatpush2.msra.mxu0 0.0
    %1070 = vmatprep.subr.mxu0 0.0
    %1071 = vmatpush2.msra.mxu0 0.0
    %1072 = vmatprep.subr.mxu0 0.0
    %1073 = vmatpush2.msra.mxu0 0.0
    %1074 = vmatprep.subr.mxu0 0.0
    %1075 = vmatpush2.msra.mxu0 0.0
    %1076 = vmatprep.subr.mxu0 0.0
    %1077 = vmatpush2.msra.mxu0 0.0
    %1078 = vmatprep.subr.mxu0 0.0
    %1079 = vmatpush2.msra.mxu0 0.0
    %1080 = vmatprep.subr.mxu0 0.0
    %1081 = vmatpush2.msra.mxu0 0.0
    %1082 = vmatprep.subr.mxu0 0.0
    %1083 = vmatpush2.msra.mxu0 0.0
    %1084 = vmatprep.subr.mxu0 0.0
    %1085 = vmatpush2.msra.mxu0 0.0
    %1086 = vmatprep.subr.mxu0 0.0
    %1087 = vmatpush2.msra.mxu0 0.0
    %1088 = vmatprep.subr.mxu0 0.0
    %1089 = vmatpush2.msra.mxu0 0.0
    %1090 = vmatprep.subr.mxu0 0.0
    %1091 = vmatpush2.msra.mxu0 0.0
    %1092 = vmatprep.subr.mxu0 0.0
    %1093 = vmatpush2.msra.mxu0 0.0
    %1094 = vmatprep.subr.mxu0 0.0
    %1095 = vmatpush2.msra.mxu0 0.0
    %1096 = vmatprep.subr.mxu0 0.0
    %1097 = vmatpush2.msra.mxu0 0.0
    %1098 = vmatprep.mubr.f32.mxu0 0.0
    %1099 = vmatmul.mubr.f32.gmra.mxu0 %v235
    %v1100 = vpop.f32.mrf.mxu0
    %v1101 = vadd.f32 %v1031, %v1100
    %v1102 = vpop.f32.mrf.mxu0
    %1103 = vdwg.mxu0
    %v1104 = vld [vmem:[%s10] sm:$0x1]
    %v1106 = vlaneseq
    %v1107 = vshrl.u32 %v1106, 7
    %v1108 = vsub.s32 0, %v1107
    %v1109 = vrot.slane %v1104, %v1108
    %v1111 = vadd.f32 %v1101, %v1109
    %vm1112 = vcmask 64512
    %1113 = vst.msk [vmem:[#allocation5] sm:$0xff] %vm1112, %v1111
    // Predicated region
    $region50: #{tpu_custom_call.1} parent=1 // pred_check
      _
    $region51: #{tpu_custom_call.1} parent=1 // pred_check_branch
      %1115 = sbr.rel (0) target = $region53
    $region52: #{tpu_custom_call.1} parent=1 // pred_region
      %s1117 = ssub.s32 128, 128
      %1118 = vsyncadd [#allocation4], %s1117
      %s1120 = sshll.u32 [#allocation5], 4
      %s1121 = int_to_ptr.vmem [resolvable:$true] %s1120
      %1123 = dma.vmem_to_hbm [thread:$0]  %s1121, 128, %s11, [#allocation4]
    $region53: #{tpu_custom_call.1} parent=1 // pred_fallthru
      _
    // Predicated region
    $region54: #{tpu_custom_call.1} parent=1 // pred_check
      _
    $region55: #{tpu_custom_call.1} parent=1 // pred_check_branch
      %1125 = sbr.rel (0) target = $region57
    $region56: #{tpu_custom_call.1} parent=1 // pred_region
      %1126 = dma.done [#allocation4], 128
    $region57: #{tpu_custom_call.1} parent=1 // pred_fallthru
      _
    %1127 = vsyncpa [#allocation3], 1
    %1128 = vsyncpa [#allocation4], 1

</llo_original>
